<compile_context>
chip_gen: v7x
topology: tpu7x:2x2x1
jax: 0.10.0
libtpu: 0.0.40
codegen_flags: <defaults>
</compile_context>

<pallas_src>
import functools

import jax
import jax.numpy as jnp
from jax.experimental import pallas as pl
from jax.experimental.pallas import tpu as pltpu


def _round_up(x, m):
    return ((x + m - 1) // m) * m


# ---------------------------------------------------------------------------
# Generic tiled  y = act(x @ w + b)  kernel (used for both fc1 and fc2).
# Grid: (batch tiles i, output tiles j, reduction tiles k) -- reduction last.
# ---------------------------------------------------------------------------
def _linear_kernel(x_ref, w_ref, b_ref, o_ref, acc_ref, *, relu):
    k = pl.program_id(2)

    @pl.when(k == 0)
    def _init():
        # Fold the bias into the accumulator init (no per-step VALU add).
        acc_ref[...] = jnp.broadcast_to(
            b_ref[...].astype(jnp.float32), acc_ref.shape)

    # Partial product for this K tile on the MXU, f32 accumulation.
    acc_ref[...] += jnp.dot(x_ref[...], w_ref[...],
                            preferred_element_type=jnp.float32)

    @pl.when(k == pl.num_programs(2) - 1)
    def _finalize():
        r = acc_ref[...]
        if relu:
            r = jnp.maximum(r, 0.0)          # ReLU in f32 on the VPU
        o_ref[...] = r.astype(o_ref.dtype)


def _vmem_capacity_bytes():
    try:
        return int(pltpu.get_tpu_info().vmem_capacity_bytes)
    except Exception:                         # pragma: no cover - defensive
        return 64 << 20                       # conservative (v7x per-TC VMEM)


def _vmem_need(tm, tn, tk, in_isz, out_isz):
    need = 2 * (tm * tk + tk * tn) * in_isz   # x / w tiles, double-buffered
    need += 2 * tn * 4                        # bias tile (f32), double-buffered
    need += 2 * tm * tn * out_isz             # output tile, double-buffered
    need += tm * tn * 4                       # f32 accumulator scratch
    return need


def _tiled_linear(x, w, b, *, tm, tn, tk, out_dtype, relu):
    """x: [M, K], w: [K, N], b: [1, N]; M % tm == K % tk == N % tn == 0."""
    M, K = x.shape
    _, N = w.shape
    in_isz = jnp.dtype(x.dtype).itemsize
    out_isz = jnp.dtype(out_dtype).itemsize

    # Generation-aware VMEM budget with ~25% headroom; shrink tk/tn until the
    # double-buffered working set fits (halving keeps divisibility of K / N).
    cap = int(0.75 * _vmem_capacity_bytes())
    while _vmem_need(tm, tn, tk, in_isz, out_isz) > cap:
        if tk > 128:
            tk //= 2
        elif tn > 128:
            tn //= 2
        else:
            break
    need = _vmem_need(tm, tn, tk, in_isz, out_isz)
    vmem_limit = int(min(max(need + (4 << 20), 16 << 20), cap))

    grid = (M // tm, N // tn, K // tk)
    flops = 2 * M * N * K
    bytes_accessed = int(M * K * in_isz + grid[0] * K * N * in_isz
                         + N * 4 + M * N * out_isz)

    return pl.pallas_call(
        functools.partial(_linear_kernel, relu=relu),
        out_shape=jax.ShapeDtypeStruct((M, N), out_dtype),
        grid_spec=pltpu.PrefetchScalarGridSpec(
            num_scalar_prefetch=0,
            grid=grid,                                   # reduction axis last
            in_specs=[
                pl.BlockSpec((tm, tk), lambda i, j, k: (i, k)),   # x
                pl.BlockSpec((tk, tn), lambda i, j, k: (k, j)),   # w
                pl.BlockSpec((1, tn), lambda i, j, k: (0, j)),    # b
            ],
            out_specs=pl.BlockSpec((tm, tn), lambda i, j, k: (i, j)),
            scratch_shapes=[pltpu.VMEM((tm, tn), jnp.float32)],
        ),
        compiler_params=pltpu.CompilerParams(
            dimension_semantics=("parallel", "parallel", "arbitrary"),
            vmem_limit_bytes=vmem_limit),
        cost_estimate=pl.CostEstimate(
            flops=flops, transcendentals=0, bytes_accessed=bytes_accessed),
    )(x, w, b)


# ---------------------------------------------------------------------------
# Word2Vec forward = fc2(relu(fc1(x)))
# ---------------------------------------------------------------------------
def prepare_params(w1, b1, w2, b2, *, compute_dtype=jnp.bfloat16,
                   tk1=None, tn1=None, tn2=None):
    """Pad + cast weights ONCE (outside the hot path) and fix the tiling.

    w1: [IN, EMB], b1: [EMB], w2: [EMB, OUT], b2: [OUT]
    (weights stored transposed vs. PyTorch so the kernels do x @ W + b).
    """
    IN, EMB = w1.shape
    EMB2, OUT = w2.shape
    assert EMB == EMB2

    if tk1 is None:
        tk1 = min(2048, _round_up(IN, 128))    # fc1 reduction tile
    else:
        tk1 = _round_up(tk1, 128)
    if tn1 is None:
        tn1 = min(512, _round_up(EMB, 128))    # fc1 out tile / fc2 K tile
    if tn2 is None:
        tn2 = min(512, _round_up(OUT, 128))    # fc2 out (vocab) tile

    IN_p = _round_up(IN, tk1)
    EMB_p = _round_up(EMB, tn1)
    OUT_p = _round_up(OUT, tn2)

    f32 = jnp.float32
    w1p = jnp.zeros((IN_p, EMB_p), compute_dtype).at[:IN, :EMB].set(
        w1.astype(compute_dtype))
    b1p = jnp.zeros((1, EMB_p), f32).at[:, :EMB].set(
        b1.reshape(1, -1).astype(f32))
    w2p = jnp.zeros((EMB_p, OUT_p), compute_dtype).at[:EMB, :OUT].set(
        w2.astype(compute_dtype))
    b2p = jnp.zeros((1, OUT_p), f32).at[:, :OUT].set(
        b2.reshape(1, -1).astype(f32))

    return dict(w1=w1p, b1=b1p, w2=w2p, b2=b2p,
                IN=IN, EMB=EMB, OUT=OUT,
                tk1=tk1, tn1=tn1, tn2=tn2,
                compute_dtype=compute_dtype)


def word2vec_forward(x, params, *, tb=512, out_dtype=jnp.float32):
    """x: [B, IN] dense (concatenated one-hots for CBOW). Returns [B, OUT]."""
    compute_dtype = params["compute_dtype"]
    IN, OUT = params["IN"], params["OUT"]
    tk1, tn1, tn2 = params["tk1"], params["tn1"], params["tn2"]
    w1p, b1p, w2p, b2p = params["w1"], params["b1"], params["w2"], params["b2"]
    IN_p, EMB_p = w1p.shape
    _, OUT_p = w2p.shape

    B = x.shape[0]
    assert x.shape[1] == IN

    # Batch tile: pad tiny batches only to the dtype sublane pack, use
    # 256-512 rows for big batches (so fc1 is MXU- not w1-streaming-bound),
    # and keep >=2 batch tiles where possible so the "parallel" axis can
    # shard across v7x's two TensorCores.
    pack = 16 if jnp.dtype(compute_dtype).itemsize == 2 else 8
    b_pack = _round_up(B, pack)
    tb = min(_round_up(tb, pack), b_pack)
    if b_pack // tb < 2 and b_pack >= 2 * pack:
        tb = _round_up(-(-b_pack // 2), pack)      # ceil(b_pack/2) -> 2 tiles
    B_p = _round_up(B, tb)

    xp = x.astype(compute_dtype)
    if (B_p, IN_p) != (B, IN):
        xp = jnp.zeros((B_p, IN_p), compute_dtype).at[:B, :IN].set(xp)

    # fc1 + ReLU (hidden kept in compute_dtype to halve its HBM round trip).
    # TODO(synk): for true one-hot CBOW inputs fc1 could be a scalar-prefetched
    # row gather of w1 (PrefetchScalarGridSpec) instead of a dense matmul,
    # removing the IN_p x EMB_p weight stream entirely; kept dense to match
    # the nn.Module interface that takes a dense x.
    h = _tiled_linear(xp, w1p, b1p, tm=tb, tn=tn1, tk=tk1,
                      out_dtype=compute_dtype, relu=True)

    # fc2 (logits), OUT/vocab dimension tiled.  Pass out_dtype=jnp.bfloat16 to
    # halve the logits writeback if downstream tolerates it.
    out = _tiled_linear(h, w2p, b2p, tm=tb, tn=tn2, tk=tn1,
                        out_dtype=out_dtype, relu=False)

    return out[:B, :OUT]


def init_linear_params(key, fan_in, fan_out):
    """PyTorch nn.Linear default init: U(-1/sqrt(fan_in), 1/sqrt(fan_in))."""
    kw, kb = jax.random.split(key)
    bound = 1.0 / jnp.sqrt(jnp.float32(fan_in))
    # Stored as [fan_in, fan_out] (transpose of PyTorch's [out, in]).
    w = jax.random.uniform(kw, (fan_in, fan_out), jnp.float32, -bound, bound)
    b = jax.random.uniform(kb, (fan_out,), jnp.float32, -bound, bound)
    return w, b


if __name__ == "__main__":
    # Small CBOW-style (skipgram=False) configuration.
    vocab_size = 64
    window_size = 2
    embedding_size = 32
    batch = 8

    in_features = vocab_size * window_size * 2   # 256
    out_features = vocab_size                    # 64

    key = jax.random.PRNGKey(0)
    kx, k1, k2 = jax.random.split(key, 3)

    x = jax.random.normal(kx, (batch, in_features), jnp.float32)
    w1, b1 = init_linear_params(k1, in_features, embedding_size)
    w2, b2 = init_linear_params(k2, embedding_size, out_features)

    # Pad + cast weights once, outside the per-call hot path.
    # tk1=128 forces 2 fc1 K-steps so the accumulator / pl.when path is tested.
    params = prepare_params(w1, b1, w2, b2, tk1=128)

    out = word2vec_forward(x, params)
    out = jax.block_until_ready(out)

    # Pure-JAX f32 reference (kernels use bf16 MXU operands + bf16 hidden).
    ref = jnp.maximum(x @ w1 + b1[None, :], 0.0) @ w2 + b2[None, :]
    assert out.shape == (batch, out_features)
    err = float(jnp.max(jnp.abs(out - ref)))
    assert jnp.allclose(out, ref, atol=5e-2, rtol=5e-2), err

    print("KERNEL_OK")
</pallas_src>

<mosaic_0001>
module attributes {stable_mosaic.version = 11 : i64} {
  func.func @_linear_kernel(%arg0: i32, %arg1: i32, %arg2: i32, %arg3: memref<16x128xbf16, #tpu.memory_space<vmem>>, %arg4: memref<128x128xbf16, #tpu.memory_space<vmem>>, %arg5: memref<1x128xf32, #tpu.memory_space<vmem>>, %arg6: memref<16x128xbf16, #tpu.memory_space<vmem>>, %arg7: memref<16x128xf32, #tpu.memory_space<vmem>>) attributes {dimension_semantics = [#tpu.dimension_semantics<parallel>, #tpu.dimension_semantics<parallel>, #tpu.dimension_semantics<arbitrary>], iteration_bounds = array<i64: 1, 1, 2>, scalar_prefetch = 0 : i64, scratch_operands = 1 : i64, tpu.core_type = #tpu.core_type<tc>, window_params = [{transform_indices = @transform_0, window_bounds = array<i64: 16, 128>}, {transform_indices = @transform_1, window_bounds = array<i64: 128, 128>}, {transform_indices = @transform_2, window_bounds = array<i64: 1, 128>}, {transform_indices = @transform_3, window_bounds = array<i64: 16, 128>}]} {
    %c0_i32 = arith.constant 0 : i32
    %0 = arith.cmpi eq, %arg2, %c0_i32 : i32
    %1 = arith.extui %0 : i1 to i32
    %c0_i32_0 = arith.constant 0 : i32
    %2 = arith.cmpi ne, %1, %c0_i32_0 : i32
    scf.if %2 {
      %c0_9 = arith.constant 0 : index
      %c0_10 = arith.constant 0 : index
      %12 = vector.load %arg5[%c0_9, %c0_10] : memref<1x128xf32, #tpu.memory_space<vmem>>, vector<1x128xf32>
      %13 = vector.shape_cast %12 : vector<1x128xf32> to vector<1x128xf32>
      %14 = vector.broadcast %13 : vector<1x128xf32> to vector<16x128xf32>
      %c0_11 = arith.constant 0 : index
      %c0_12 = arith.constant 0 : index
      %15 = vector.load %arg7[%c0_11, %c0_12] : memref<16x128xf32, #tpu.memory_space<vmem>>, vector<16x128xf32>
      tpu.vector_store %arg7[%c0_11, %c0_12], %14 {strides = array<i32>} : memref<16x128xf32, #tpu.memory_space<vmem>>, vector<16x128xf32>,
    } else {
    }
    %c0 = arith.constant 0 : index
    %c0_1 = arith.constant 0 : index
    %3 = vector.load %arg7[%c0, %c0_1] : memref<16x128xf32, #tpu.memory_space<vmem>>, vector<16x128xf32>
    %c0_2 = arith.constant 0 : index
    %c0_3 = arith.constant 0 : index
    %4 = vector.load %arg3[%c0_2, %c0_3] : memref<16x128xbf16, #tpu.memory_space<vmem>>, vector<16x128xbf16>
    %c0_4 = arith.constant 0 : index
    %c0_5 = arith.constant 0 : index
    %5 = vector.load %arg4[%c0_4, %c0_5] : memref<128x128xbf16, #tpu.memory_space<vmem>>, vector<128x128xbf16>
    %cst = arith.constant dense<0.000000e+00> : vector<16x128xf32>
    %6 = tpu.matmul %4, %5, %cst {dimension_numbers = #tpu.dot_dimension_numbers<[1], [0], [0], [1], [0, 0, 1, 1], [], []>} : vector<16x128xbf16>, vector<128x128xbf16>, vector<16x128xf32> -> vector<16x128xf32>
    %7 = arith.addf %3, %6 : vector<16x128xf32>
    %c0_6 = arith.constant 0 : index
    %c0_7 = arith.constant 0 : index
    %8 = vector.load %arg7[%c0_6, %c0_7] : memref<16x128xf32, #tpu.memory_space<vmem>>, vector<16x128xf32>
    tpu.vector_store %arg7[%c0_6, %c0_7], %7 {strides = array<i32>} : memref<16x128xf32, #tpu.memory_space<vmem>>, vector<16x128xf32>,
    %c1_i32 = arith.constant 1 : i32
    %9 = arith.cmpi eq, %arg2, %c1_i32 : i32
    %10 = arith.extui %9 : i1 to i32
    %c0_i32_8 = arith.constant 0 : i32
    %11 = arith.cmpi ne, %10, %c0_i32_8 : i32
    scf.if %11 {
      %c0_9 = arith.constant 0 : index
      %c0_10 = arith.constant 0 : index
      %12 = vector.load %arg7[%c0_9, %c0_10] : memref<16x128xf32, #tpu.memory_space<vmem>>, vector<16x128xf32>
      %cst_11 = arith.constant 0.000000e+00 : f32
      %13 = vector.broadcast %cst_11 : f32 to vector<16x128xf32>
      %14 = arith.maximumf %12, %13 : vector<16x128xf32>
      %15 = arith.truncf %14 : vector<16x128xf32> to vector<16x128xbf16>
      %c0_12 = arith.constant 0 : index
      %c0_13 = arith.constant 0 : index
      %16 = vector.load %arg6[%c0_12, %c0_13] : memref<16x128xbf16, #tpu.memory_space<vmem>>, vector<16x128xbf16>
      tpu.vector_store %arg6[%c0_12, %c0_13], %15 {strides = array<i32>} : memref<16x128xbf16, #tpu.memory_space<vmem>>, vector<16x128xbf16>,
    } else {
    }
    return
  }
  func.func @transform_0(%arg0: i32, %arg1: i32, %arg2: i32) -> (i32, i32) {
    %c0_i32 = arith.constant 0 : i32
    return %arg0, %arg2 : i32, i32
  }
  func.func @transform_1(%arg0: i32, %arg1: i32, %arg2: i32) -> (i32, i32) {
    %c0_i32 = arith.constant 0 : i32
    return %arg2, %arg1 : i32, i32
  }
  func.func @transform_2(%arg0: i32, %arg1: i32, %arg2: i32) -> (i32, i32) {
    %c0_i32 = arith.constant 0 : i32
    %c0_i32_0 = arith.constant 0 : i32
    return %c0_i32, %arg1 : i32, i32
  }
  func.func @transform_3(%arg0: i32, %arg1: i32, %arg2: i32) -> (i32, i32) {
    %c0_i32 = arith.constant 0 : i32
    return %arg0, %arg1 : i32, i32
  }
}

</mosaic_0001>

<llo_original>
// kernel: tpu_custom_call.1
$region0: #{tpu_custom_call.1}
  #allocation0 [shape = 'u32[]', space=smem, size = 0x4, offset = 0x4, fixed_abs, tag = 'smem constant byte address 0x4 - core index']
  #allocation1 [shape = 'u32[144,128]{1,0:T(1,128)}', space=vmem, size = 0x12000, scoped, tag = 'internal scratch']
  #allocation2 [shape = 'f32[16,128]{1,0:T(8,128)}', space=vmem, size = 0x2000, scoped, tag = 'scratch operand']
  %s0 = inlined_call_operand.hbm [shape: bf16[16,256], index: 0, kind: input, shape index: {}]
  %s1 = inlined_call_operand.hbm [shape: bf16[256,128], index: 1, kind: input, shape index: {}]
  %s2 = inlined_call_operand.vmem [shape: f32[1,128], index: 2, kind: input, shape index: {}]
  %s3 = inlined_call_operand.hbm [shape: bf16[16,128], index: 3, kind: output, shape index: {}]
  %s4 = sld [smem:[#allocation0]]
  $region61: #{tpu_custom_call.1} parent=0
    _
  %s6 = ssub.s32 1, %s4
  %s7 = scalar_select 0, %s6, %s4
  $region1: #{tpu_custom_call.1} parent=0
    #allocation3 [shape = 'u8[8192]{0}', space=vmem, size = 0x2000, scoped, tag = 'input window, operand 0']
    #allocation4 [shape = 's32[2]{0}', space=sflag, size = 0x8, scoped, tag = 'scoped memory for tpu_custom_call.1']
    #allocation5 [shape = 's32[2]{0}', space=sflag, size = 0x8, scoped, tag = 'scoped memory for tpu_custom_call.1']
    #allocation6 [shape = 'u8[65536]{0}', space=vmem, size = 0x10000, scoped, tag = 'input window, operand 1']
    #allocation7 [shape = 's32[2]{0}', space=sflag, size = 0x8, scoped, tag = 'scoped memory for tpu_custom_call.1']
    #allocation8 [shape = 'u8[4096]{0}', space=vmem, size = 0x1000, scoped, tag = 'output window, operand 0, single buffered']
    %8 = vsyncpa [#allocation4], 0
    %s9 = scalar_lea.sflag [#allocation4], 1
    %10 = vsyncpa %s9, 0
    %11 = vsyncpa [#allocation7], 0
    %s12 = scalar_lea.sflag [#allocation7], 1
    %13 = vsyncpa %s12, 0
    %14 = vsyncpa [#allocation5], 0
    loop: start=0, step=1, limit=4
    $region2: #{tpu_custom_call.1} parent=1 // loop_pre_header
      _
    $region3: #{tpu_custom_call.1} parent=1 // loop_header
      %s16 = sphi 0, %s20
      %p17 = scmp.ge.s32.totalorder %s16, 4
      %s23 = sphi 0, %s42
      %s24 = sphi 0, %s38
      %s25 = sphi 0, %s34
      %s26 = sphi 0, %s23
      %s27 = sphi 0, %s24
      %s28 = sphi 0, %s25
      %s29 = sphi 0, %s26
      %s30 = sphi 0, %s27
      %s31 = sphi 0, %s28
      %s47 = sphi 0, %s49
      %s50 = sphi 0, %s47
      %s51 = sphi 0, %s50
      %s67 = sphi 0, %s51
      %s75 = sphi 0, %s77
      %s78 = sphi 0, %s75
      %s79 = sphi 0, %s78
      %s95 = sphi 0, %s79
      %s101 = sphi 0, %s103
      %s104 = sphi 0, %s101
      %s105 = sphi 0, %s104
      %s121 = sphi 0, %s105
      %s129 = sphi 0, %s131
      %s132 = sphi 0, %s129
      %s133 = sphi 0, %s132
      %s149 = sphi 0, %s133
    $region4: #{tpu_custom_call.1} parent=1 // loop_header_branch
      %19 = sbr.rel (%p17) target = $region8
    $region5: #{tpu_custom_call.1} parent=1 // loop_body
      %s21 = ssub.s32 %s16, 1
      %s22 = ssub.s32 %s16, 2
      %s32 = sadd.s32 1, %s25
      %p33 = scmp.ge.s32.totalorder %s32, 2
      %s34 = scalar_select %p33, 0, %s32
      %s35 = sadd.s32 1, %s24
      %s36 = scalar_select %p33, %s35, %s24
      %p37 = scmp.ge.s32.totalorder %s36, 1
      %s38 = scalar_select %p37, 0, %s36
      %s39 = sadd.s32 1, %s23
      %s40 = scalar_select %p37, %s39, %s23
      %p41 = scmp.ge.s32.totalorder %s40, 1
      %s42 = scalar_select %p41, 0, %s40
      %s43 = ssub.s32 %s23, %s42
      %s44 = ssub.s32 %s25, %s34
      %s45 = sor.u32 %s43, %s44
      %p46 = scmp.eq.s32.totalorder %s45, 0
      %s48 = sadd.s32 %s47, 1
      %s49 = scalar_select %p46, %s47, %s48
      %p52 = pneg %p46
      %p53 = scmp.eq.s32.totalorder %s16, 1
      %p54 = por %p52, %p53
      %p55 = scmp.ne.s32.totalorder %s47, %s50
      %p56 = scmp.eq.s32.totalorder %s16, 0
      %p57 = por %p55, %p56
      %p58 = scmp.ne.s32.totalorder %s47, %s50
      %p59 = scmp.eq.s32.totalorder %s21, 1
      %p60 = por %p58, %p59
      %p61 = scmp.ne.s32.totalorder %s50, %s51
      %p62 = scmp.eq.s32.totalorder %s21, 0
      %p63 = por %p61, %p62
      %p64 = scmp.ne.s32.totalorder %s50, %s51
      %p65 = scmp.eq.s32.totalorder %s22, 1
      %p66 = por %p64, %p65
      %p68 = scmp.ne.s32.totalorder %s51, %s67
      %p69 = scmp.eq.s32.totalorder %s22, 0
      %p70 = por %p68, %p69
      %s71 = ssub.s32 %s25, %s34
      %s72 = ssub.s32 %s24, %s38
      %s73 = sor.u32 %s71, %s72
      %p74 = scmp.eq.s32.totalorder %s73, 0
      %s76 = sadd.s32 %s75, 1
      %s77 = scalar_select %p74, %s75, %s76
      %p80 = pneg %p74
      %p81 = scmp.eq.s32.totalorder %s16, 1
      %p82 = por %p80, %p81
      %p83 = scmp.ne.s32.totalorder %s75, %s78
      %p84 = scmp.eq.s32.totalorder %s16, 0
      %p85 = por %p83, %p84
      %p86 = scmp.ne.s32.totalorder %s75, %s78
      %p87 = scmp.eq.s32.totalorder %s21, 1
      %p88 = por %p86, %p87
      %p89 = scmp.ne.s32.totalorder %s78, %s79
      %p90 = scmp.eq.s32.totalorder %s21, 0
      %p91 = por %p89, %p90
      %p92 = scmp.ne.s32.totalorder %s78, %s79
      %p93 = scmp.eq.s32.totalorder %s22, 1
      %p94 = por %p92, %p93
      %p96 = scmp.ne.s32.totalorder %s79, %s95
      %p97 = scmp.eq.s32.totalorder %s22, 0
      %p98 = por %p96, %p97
      %s99 = ssub.s32 %s24, %s38
      %p100 = scmp.eq.s32.totalorder %s99, 0
      %s102 = sadd.s32 %s101, 1
      %s103 = scalar_select %p100, %s101, %s102
      %p106 = pneg %p100
      %p107 = scmp.eq.s32.totalorder %s16, 1
      %p108 = por %p106, %p107
      %p109 = scmp.ne.s32.totalorder %s101, %s104
      %p110 = scmp.eq.s32.totalorder %s16, 0
      %p111 = por %p109, %p110
      %p112 = scmp.ne.s32.totalorder %s101, %s104
      %p113 = scmp.eq.s32.totalorder %s21, 1
      %p114 = por %p112, %p113
      %p115 = scmp.ne.s32.totalorder %s104, %s105
      %p116 = scmp.eq.s32.totalorder %s21, 0
      %p117 = por %p115, %p116
      %p118 = scmp.ne.s32.totalorder %s104, %s105
      %p119 = scmp.eq.s32.totalorder %s22, 1
      %p120 = por %p118, %p119
      %p122 = scmp.ne.s32.totalorder %s105, %s121
      %p123 = scmp.eq.s32.totalorder %s22, 0
      %p124 = por %p122, %p123
      %s125 = ssub.s32 %s23, %s42
      %s126 = ssub.s32 %s24, %s38
      %s127 = sor.u32 %s125, %s126
      %p128 = scmp.eq.s32.totalorder %s127, 0
      %s130 = sadd.s32 %s129, 1
      %s131 = scalar_select %p128, %s129, %s130
      %p134 = pneg %p128
      %p135 = scmp.eq.s32.totalorder %s16, 1
      %p136 = por %p134, %p135
      %p137 = scmp.ne.s32.totalorder %s129, %s132
      %p138 = scmp.eq.s32.totalorder %s16, 0
      %p139 = por %p137, %p138
      %p140 = scmp.ne.s32.totalorder %s129, %s132
      %p141 = scmp.eq.s32.totalorder %s21, 1
      %p142 = por %p140, %p141
      %p143 = scmp.ne.s32.totalorder %s132, %s133
      %p144 = scmp.eq.s32.totalorder %s21, 0
      %p145 = por %p143, %p144
      %p146 = scmp.ne.s32.totalorder %s132, %s133
      %p147 = scmp.eq.s32.totalorder %s22, 1
      %p148 = por %p146, %p147
      %p150 = scmp.ne.s32.totalorder %s133, %s149
      %p151 = scmp.eq.s32.totalorder %s22, 0
      %p152 = por %p150, %p151
      %p153 = scmp.le.s32.totalorder 1, %s16
      %p154 = scmp.lt.s32.totalorder %s16, 3
      %p155 = pnand %p153, %p154
      %p156 = pneg %p155
      // Predicated region
      $region9: #{tpu_custom_call.1} parent=5 // pred_check
        _
      $region10: #{tpu_custom_call.1} parent=5 // pred_check_branch
        %158 = sbr.rel (%p155) target = $region12
      $region11: #{tpu_custom_call.1} parent=5 // pred_region
        %s159 = ssub.s32 %s16, 1
        // Predicated region
        $region13: #{tpu_custom_call.1} parent=11 // pred_check
          %p160 = pneg %p117
        $region14: #{tpu_custom_call.1} parent=11 // pred_check_branch
          %162 = sbr.rel (%p160) target = $region16
        $region15: #{tpu_custom_call.1} parent=11 // pred_region
          %p163 = scmp.lt.s32.totalorder %s27, 0
          %s164 = scalar_select %p163, %s27, 0
          %s165 = scalar_lea.vmem %s2, %s164
        $region16: #{tpu_custom_call.1} parent=11 // pred_fallthru
          _
      $region12: #{tpu_custom_call.1} parent=5 // pred_fallthru
        _
      %p166 = scmp.lt.s32.totalorder %s16, 2
      // Predicated region
      $region17: #{tpu_custom_call.1} parent=5 // pred_check
        %p167 = pneg %p166
      $region18: #{tpu_custom_call.1} parent=5 // pred_check_branch
        %169 = sbr.rel (%p167) target = $region20
      $region19: #{tpu_custom_call.1} parent=5 // pred_region
        // Predicated region
        $region21: #{tpu_custom_call.1} parent=19 // pred_check
          %p170 = pneg %p57
        $region22: #{tpu_custom_call.1} parent=19 // pred_check_branch
          %172 = sbr.rel (%p170) target = $region24
        $region23: #{tpu_custom_call.1} parent=19 // pred_region
          %s173 = sand.u32 %s47, 1
          %s174 = scalar_lea.sflag [#allocation4], %s173
          %s175 = sand.u32 %s47, 1
          %s176 = smul.addr %s175, 8
          %s177 = scalar_lea.vmem [#allocation3], %s176
          %s178 = smul.u32 2, %s23
          %s180 = ssub.s32 128, 128
          %181 = vsyncadd %s174, %s180
          %s182 = smul.addr %s178, 2
          %s183 = sadd.s32 %s25, %s182
          %s184 = smul.addr %s183, 64
          %s185 = scalar_lea.hbm %s0, %s184
          %s186 = sshll.u32 %s177, 4
          %s187 = int_to_ptr.vmem [resolvable:$true] %s186
          %192 = dma.hbm_to_vmem [thread:$0]  %s185, 128, %s187, %s174, 128, 64, 4
        $region24: #{tpu_custom_call.1} parent=19 // pred_fallthru
          _
        // Predicated region
        $region25: #{tpu_custom_call.1} parent=19 // pred_check
          %p193 = pneg %p85
        $region26: #{tpu_custom_call.1} parent=19 // pred_check_branch
          %195 = sbr.rel (%p193) target = $region28
        $region27: #{tpu_custom_call.1} parent=19 // pred_region
          %s196 = sand.u32 %s75, 1
          %s197 = scalar_lea.sflag [#allocation7], %s196
          %s198 = sand.u32 %s75, 1
          %s199 = smul.addr %s198, 64
          %s200 = scalar_lea.vmem [#allocation6], %s199
          %s201 = smul.u32 16, %s25
          %s203 = ssub.s32 1024, 1024
          %204 = vsyncadd %s197, %s203
          %s205 = sadd.s32 %s24, %s201
          %s206 = smul.addr %s205, 64
          %s207 = scalar_lea.hbm %s1, %s206
          %s208 = sshll.u32 %s200, 4
          %s209 = int_to_ptr.vmem [resolvable:$true] %s208
          %214 = dma.hbm_to_vmem [thread:$0]  %s207, 1024, %s209, %s197, 64, 64, 4
        $region28: #{tpu_custom_call.1} parent=19 // pred_fallthru
          _
      $region20: #{tpu_custom_call.1} parent=5 // pred_fallthru
        _
      %p215 = scmp.le.s32.totalorder 1, %s16
      %p216 = scmp.lt.s32.totalorder %s16, 3
      %p217 = pnand %p215, %p216
      %p218 = pneg %p217
      // Predicated region
      $region29: #{tpu_custom_call.1} parent=5 // pred_check
        _
      $region30: #{tpu_custom_call.1} parent=5 // pred_check_branch
        %220 = sbr.rel (%p217) target = $region32
      $region31: #{tpu_custom_call.1} parent=5 // pred_region
        %s221 = ssub.s32 %s16, 1
        %s222 = sand.u32 %s50, 1
        %s223 = scalar_lea.sflag [#allocation4], %s222
        %s224 = sand.u32 %s50, 1
        %s225 = smul.addr %s224, 8
        %s226 = scalar_lea.vmem [#allocation3], %s225
        // Predicated region
        $region33: #{tpu_custom_call.1} parent=31 // pred_check
          %p227 = pneg %p63
        $region34: #{tpu_custom_call.1} parent=31 // pred_check_branch
          %229 = sbr.rel (%p227) target = $region36
        $region35: #{tpu_custom_call.1} parent=31 // pred_region
          %230 = dma.done %s223, 128
        $region36: #{tpu_custom_call.1} parent=31 // pred_fallthru
          _
        %s231 = sand.u32 %s78, 1
        %s232 = scalar_lea.sflag [#allocation7], %s231
        %s233 = sand.u32 %s78, 1
        %s234 = smul.addr %s233, 64
        %s235 = scalar_lea.vmem [#allocation6], %s234
        // Predicated region
        $region37: #{tpu_custom_call.1} parent=31 // pred_check
          %p236 = pneg %p91
        $region38: #{tpu_custom_call.1} parent=31 // pred_check_branch
          %238 = sbr.rel (%p236) target = $region40
        $region39: #{tpu_custom_call.1} parent=31 // pred_region
          %239 = dma.done %s232, 1024
        $region40: #{tpu_custom_call.1} parent=31 // pred_fallthru
          _
        %s240 = sand.u32 %s50, 1
        %s241 = scalar_lea.sflag [#allocation4], %s240
        %s242 = sand.u32 %s50, 1
        %s243 = smul.addr %s242, 8
        %s244 = scalar_lea.vmem [#allocation3], %s243
        %p245 = pneg %p63
        %p246 = pneg %p60
        %s247 = sand.u32 %s78, 1
        %s248 = scalar_lea.sflag [#allocation7], %s247
        %s249 = sand.u32 %s78, 1
        %s250 = smul.addr %s249, 64
        %s251 = scalar_lea.vmem [#allocation6], %s250
        %p252 = pneg %p91
        %p253 = pneg %p88
        %p254 = scmp.lt.s32.totalorder %s27, 0
        %s255 = scalar_select %p254, %s27, 0
        %s256 = scalar_lea.vmem %s2, %s255
        %p257 = pneg %p117
        %p258 = pneg %p114
        %p259 = pneg %p145
        %p260 = pneg %p142
        %s261 = smul.u32 2, %s26
        %s262 = smul.u32 16, %s28
        %p263 = scmp.lt.s32.totalorder %s27, 0
        %s264 = scalar_select %p263, %s27, 0
        %s265 = scalar_lea.vmem %s2, %s264
        %s266 = smul.u32 2, %s26
        %p268 = scmp.eq.s32.totalorder %s28, 0
        // Predicated region
        $region41: #{tpu_custom_call.1} parent=31 // pred_check
          %p269 = pneg %p268
        $region42: #{tpu_custom_call.1} parent=31 // pred_check_branch
          %271 = sbr.rel (%p269) target = $region44
        $region43: #{tpu_custom_call.1} parent=31 // pred_region
          %v272 = vld [vmem:[%s265] sm:$0x1]
          %v274 = vlaneseq
          %v275 = vshrl.u32 %v274, 7
          %v276 = vsub.s32 0, %v275
          %v277 = vrot.slane %v272, %v276
          %279 = vst [vmem:[#allocation2] sm:$0xff] %v277
          %280 = vst [vmem:[#allocation2 + $0x8] sm:$0xff] %v277
        $region44: #{tpu_custom_call.1} parent=31 // pred_fallthru
          _
        %v281 = vld [vmem:[#allocation2] sm:$0xff]
        %v282 = vld [vmem:[#allocation2 + $0x8] sm:$0xff]
        %v283 = vld [vmem:[%s226] sm:$0xf]
        %v284 = vld [vmem:[%s226 + $0x4] sm:$0xf]
        %v285 = vld [vmem:[%s235] sm:$0xf]
        %v286 = vld [vmem:[%s235 + $0x4] sm:$0xf]
        %v287 = vld [vmem:[%s235 + $0x8] sm:$0xf]
        %v288 = vld [vmem:[%s235 + $0xc] sm:$0xf]
        %v289 = vld [vmem:[%s235 + $0x10] sm:$0xf]
        %v290 = vld [vmem:[%s235 + $0x14] sm:$0xf]
        %v291 = vld [vmem:[%s235 + $0x18] sm:$0xf]
        %v292 = vld [vmem:[%s235 + $0x1c] sm:$0xf]
        %v293 = vld [vmem:[%s235 + $0x20] sm:$0xf]
        %v294 = vld [vmem:[%s235 + $0x24] sm:$0xf]
        %v295 = vld [vmem:[%s235 + $0x28] sm:$0xf]
        %v296 = vld [vmem:[%s235 + $0x2c] sm:$0xf]
        %v297 = vld [vmem:[%s235 + $0x30] sm:$0xf]
        %v298 = vld [vmem:[%s235 + $0x34] sm:$0xf]
        %v299 = vld [vmem:[%s235 + $0x38] sm:$0xf]
        %v300 = vld [vmem:[%s235 + $0x3c] sm:$0xf]
        %v303 = vunpack.c.l.b16 %v283
        %v304 = vunpack.c.l.b16 %v284
        %v305 = vpack.c.b16 %v304, %v303
        %v323 = vunpack.c.l.b16 %v285
        %v324 = vunpack.c.l.b16 %v286
        %v325 = vunpack.c.l.b16 %v287
        %v326 = vunpack.c.l.b16 %v288
        %v327 = vunpack.c.l.b16 %v289
        %v328 = vunpack.c.l.b16 %v290
        %v329 = vunpack.c.l.b16 %v291
        %v330 = vunpack.c.l.b16 %v292
        %v331 = vunpack.c.l.b16 %v293
        %v332 = vunpack.c.l.b16 %v294
        %v333 = vunpack.c.l.b16 %v295
        %v334 = vunpack.c.l.b16 %v296
        %v335 = vunpack.c.l.b16 %v297
        %v336 = vunpack.c.l.b16 %v298
        %v337 = vunpack.c.l.b16 %v299
        %v338 = vunpack.c.l.b16 %v300
        %v339 = vpack.c.b16 %v324, %v323
        %v340 = vpack.c.b16 %v326, %v325
        %v341 = vpack.c.b16 %v328, %v327
        %v342 = vpack.c.b16 %v330, %v329
        %v343 = vpack.c.b16 %v332, %v331
        %v344 = vpack.c.b16 %v334, %v333
        %v345 = vpack.c.b16 %v336, %v335
        %v346 = vpack.c.b16 %v338, %v337
        %355 = vmatprep.subr.bf16.mxu0 0
        %356 = vmatpush1.bf16.msra.mxu0 %v339
        %357 = vmatprep.subr.bf16.mxu0 0
        %358 = vmatpush1.bf16.msra.mxu0 %v340
        %359 = vmatprep.subr.bf16.mxu0 0
        %360 = vmatpush1.bf16.msra.mxu0 %v341
        %361 = vmatprep.subr.bf16.mxu0 0
        %362 = vmatpush1.bf16.msra.mxu0 %v342
        %363 = vmatprep.subr.bf16.mxu0 0
        %364 = vmatpush1.bf16.msra.mxu0 %v343
        %365 = vmatprep.subr.bf16.mxu0 0
        %366 = vmatpush1.bf16.msra.mxu0 %v344
        %367 = vmatprep.subr.bf16.mxu0 0
        %368 = vmatpush1.bf16.msra.mxu0 %v345
        %369 = vmatprep.subr.bf16.mxu0 0
        %370 = vmatpush1.bf16.msra.mxu0 %v346
        %371 = vmatprep.subr.bf16.mxu0 0
        %372 = vmatpush1.bf16.msra.mxu0 0
        %373 = vmatprep.subr.bf16.mxu0 0
        %374 = vmatpush1.bf16.msra.mxu0 0
        %375 = vmatprep.subr.bf16.mxu0 0
        %376 = vmatpush1.bf16.msra.mxu0 0
        %377 = vmatprep.subr.bf16.mxu0 0
        %378 = vmatpush1.bf16.msra.mxu0 0
        %379 = vmatprep.subr.bf16.mxu0 0
        %380 = vmatpush1.bf16.msra.mxu0 0
        %381 = vmatprep.subr.bf16.mxu0 0
        %382 = vmatpush1.bf16.msra.mxu0 0
        %383 = vmatprep.subr.bf16.mxu0 0
        %384 = vmatpush1.bf16.msra.mxu0 0
        %385 = vmatprep.subr.bf16.mxu0 0
        %386 = vmatpush1.bf16.msra.mxu0 0
        %387 = vmatprep.mubr.bf16.mxu0 0
        %388 = vmatmul.mubr.bf16.gmra.mrb[0].mxu0 %v305
        %v389 = vpop.f32.mrb[0].mxu0
        %v390 = vadd.f32 0.0, %v389
        %v391 = vpop.f32.mrb[0].mxu0
        %v392 = vpop.f32.mrb[0].mxu0
        %v393 = vadd.f32 0.0, %v392
        %v394 = vpop.f32.mrb[0].mxu0
        %395 = vdwg.mxu0
        %v396 = vadd.f32 %v281, %v390
        %v397 = vadd.f32 %v282, %v393
        %398 = vst [vmem:[#allocation2] sm:$0xff] %v396
        %399 = vst [vmem:[#allocation2 + $0x8] sm:$0xff] %v397
        %p400 = scmp.eq.s32.totalorder %s28, 1
        // Predicated region
        $region45: #{tpu_custom_call.1} parent=31 // pred_check
          %p401 = pneg %p400
        $region46: #{tpu_custom_call.1} parent=31 // pred_check_branch
          %403 = sbr.rel (%p401) target = $region48
        $region47: #{tpu_custom_call.1} parent=31 // pred_region
          %v404 = vld [vmem:[#allocation2] sm:$0xff]
          %v405 = vld [vmem:[#allocation2 + $0x8] sm:$0xff]
          %v406 = vmax.f32 %v404, 0.0
          %v407 = vmax.f32 %v405, 0.0
          %v408 = vpack.c.bf16 %v407, %v406
          %v410 = vunpack.c.l.b16 %v408
          %v411 = vunpack.c.h.b16 %v408
          %v412 = vpack.c.b16 %v410, %v410
          %v413 = vpack.c.b16 %v411, %v411
          %416 = vst [vmem:[#allocation8] sm:$0xf] %v412
          %417 = vst [vmem:[#allocation8 + $0x4] sm:$0xf] %v413
        $region48: #{tpu_custom_call.1} parent=31 // pred_fallthru
          _
        // Predicated region
        $region49: #{tpu_custom_call.1} parent=31 // pred_check
          %p418 = pneg %p142
        $region50: #{tpu_custom_call.1} parent=31 // pred_check_branch
          %420 = sbr.rel (%p418) target = $region52
        $region51: #{tpu_custom_call.1} parent=31 // pred_region
          %s421 = smul.u32 2, %s26
          %s423 = ssub.s32 128, 128
          %424 = vsyncadd [#allocation5], %s423
          %s425 = sadd.s32 %s27, %s421
          %s426 = smul.addr %s425, 64
          %s427 = scalar_lea.hbm %s3, %s426
          %s428 = sshll.u32 [#allocation8], 4
          %s429 = int_to_ptr.vmem [resolvable:$true] %s428
          %434 = dma.vmem_to_hbm [thread:$0]  %s429, 128, %s427, [#allocation5], 64, 64, 4
        $region52: #{tpu_custom_call.1} parent=31 // pred_fallthru
          _
        // Predicated region
        $region53: #{tpu_custom_call.1} parent=31 // pred_check
          %p435 = pneg %p142
        $region54: #{tpu_custom_call.1} parent=31 // pred_check_branch
          %437 = sbr.rel (%p435) target = $region56
        $region55: #{tpu_custom_call.1} parent=31 // pred_region
          %438 = dma.done [#allocation5], 128
        $region56: #{tpu_custom_call.1} parent=31 // pred_fallthru
          _
      $region32: #{tpu_custom_call.1} parent=5 // pred_fallthru
        _
      %p439 = scmp.le.s32.totalorder 2, %s16
      // Predicated region
      $region57: #{tpu_custom_call.1} parent=5 // pred_check
        %p440 = pneg %p439
      $region58: #{tpu_custom_call.1} parent=5 // pred_check_branch
        %442 = sbr.rel (%p440) target = $region60
      $region59: #{tpu_custom_call.1} parent=5 // pred_region
        %s443 = ssub.s32 %s16, 2
      $region60: #{tpu_custom_call.1} parent=5 // pred_fallthru
        _
    $region6: #{tpu_custom_call.1} parent=1 // loop_footer
      %s20 = sadd.s32 1, %s16
    $region7: #{tpu_custom_call.1} parent=1 // loop_footer_branch
      %15 = sbr.rel target = $region3
    $region8: #{tpu_custom_call.1} parent=1 // loop_exit
      _
    %444 = vsyncpa [#allocation4], 1
    %s445 = scalar_lea.sflag [#allocation4], 1
    %446 = vsyncpa %s445, 1
    %447 = vsyncpa [#allocation7], 1
    %s448 = scalar_lea.sflag [#allocation7], 1
    %449 = vsyncpa %s448, 1
    %450 = vsyncpa [#allocation5], 1
    %s451 = scalar_lea.sflag [#allocation5], 1
    %452 = vsyncpa %s451, 1

</llo_original>
